<compile_context>
chip_gen: v7x
topology: tpu7x:2x2x1
jax: 0.10.0
libtpu: 0.0.40
codegen_flags: <defaults>
</compile_context>

<pallas_src>
import functools

import jax
import jax.numpy as jnp
from jax.experimental import pallas as pl
from jax.experimental.pallas import tpu as pltpu

LANES = 128  # TPU lane count; padded feature width of hidden/output slabs


def _round_up(n, m):
    return (n + m - 1) // m * m


def qnet_kernel(x_ref, w1_ref, b1_ref, w23_ref, o_ref):
    """Fused 3-layer MLP.

    x_ref  : [TB, obs_dim]   observations at natural width (f32 or bf16)
    w1_ref : [obs_dim, 128]  layer-1 weights (compute dtype: bf16 or f32)
    b1_ref : [1, 128] f32    layer-1 bias; b1[hidden] == 1.0 is the "carry" lane
    w23_ref: [2, 128, 128]   layers 2/3 weights with bias row + carry column folded in
    o_ref  : [TB, 128]       Q-values in lanes [0, act_dim), zeros elsewhere
    """
    cd = w1_ref.dtype
    x = x_ref[...].astype(cd)
    # Layer 1: single broadcast bias add; its spare 1.0 survives the ReLU and
    # becomes the ones-carry feature consumed by the folded biases of layers 2/3.
    h1 = jnp.maximum(
        jnp.dot(x, w1_ref[...], preferred_element_type=jnp.float32) + b1_ref[...],
        0.0)
    # Layers 2 & 3: pure MXU matmuls (bias row + carry column baked into weights).
    h2 = jnp.maximum(
        jnp.dot(h1.astype(cd), w23_ref[0], preferred_element_type=jnp.float32),
        0.0)
    out = jnp.dot(h2.astype(cd), w23_ref[1], preferred_element_type=jnp.float32)
    o_ref[...] = out.astype(o_ref.dtype)


def pack_qnet_params(params, obs_dim, hidden, act_dim, dtype=jnp.bfloat16):
    """Pack (w1,b1,w2,b2,w3,b3) into {w1:[obs_dim,128], b1:[1,128] f32, w23:[2,128,128]}.

    * w1 stored [in, out] (transpose of PyTorch [out, in]), zero-padded to 128 lanes.
    * b1 is kept f32 (exact bias add); b1[0, hidden] = 1.0 is the carry seed.
    * w23[l]: rows 0..hidden-1 = weights, row `hidden` = bias (+ carry 1.0 for layer 2),
      so h @ W_aug == h @ W + b with no in-kernel bias adds.
    """
    assert hidden + 1 <= LANES and act_dim <= LANES
    w1 = jnp.zeros((obs_dim, LANES), jnp.float32)
    w1 = w1.at[:, :hidden].set(params["w1"])

    b1 = jnp.zeros((1, LANES), jnp.float32)
    b1 = b1.at[0, :hidden].set(params["b1"].reshape(-1))
    b1 = b1.at[0, hidden].set(1.0)                     # carry lane: relu(0 + 1) == 1

    w23 = jnp.zeros((2, LANES, LANES), jnp.float32)
    w23 = w23.at[0, :hidden, :hidden].set(params["w2"])
    w23 = w23.at[0, hidden, :hidden].set(params["b2"].reshape(-1))
    w23 = w23.at[0, hidden, hidden].set(1.0)           # re-seed carry for layer 3
    w23 = w23.at[1, :hidden, :act_dim].set(params["w3"])
    w23 = w23.at[1, hidden, :act_dim].set(params["b3"].reshape(-1))

    return {"w1": w1.astype(dtype), "b1": b1, "w23": w23.astype(dtype)}


def _pick_block_rows(batch, block_rows):
    """Batch tile size: 8-aligned, >=2 tiles for big batches (v7x's two TCs)."""
    if batch <= 8:
        return batch                      # single full-dim block, zero padding
    block_rows = max(8, _round_up(block_rows, 8))
    tb = min(block_rows, _round_up(batch, 8))
    # Split mid/large batches that would otherwise be one tile, keeping tiles >=~256
    # so the ~0.35us per-step overhead stays amortized.
    if tb > 512 and pl.cdiv(batch, tb) < 2:
        tb = _round_up(pl.cdiv(batch, 2), 8)
    return tb


@functools.partial(jax.jit, static_argnames=("block_rows", "out_dtype"))
def qnet_apply(x, packed, *, block_rows=1024, out_dtype=jnp.bfloat16):
    """Performance API. x: [B, obs_dim] (f32 or bf16). Returns the lane-dense
    [B, 128] Q slab: lanes [0, act_dim) are the Q-values, remaining lanes are 0.
    No wrapper-side pad/concat/slice ops touch HBM."""
    B, obs_dim = x.shape
    if B == 0:
        return jnp.zeros((0, LANES), out_dtype)
    w1, b1, w23 = packed["w1"], packed["b1"], packed["w23"]

    TB = _pick_block_rows(B, block_rows)
    n_tiles = pl.cdiv(B, TB)              # ragged last tile: no round_up(B, TB) waste

    flops = 2 * B * (obs_dim * LANES + 2 * LANES * LANES)
    bytes_accessed = (x.size * x.dtype.itemsize
                      + w1.size * w1.dtype.itemsize
                      + b1.size * b1.dtype.itemsize
                      + w23.size * w23.dtype.itemsize
                      + B * LANES * jnp.dtype(out_dtype).itemsize)

    return pl.pallas_call(
        qnet_kernel,
        out_shape=jax.ShapeDtypeStruct((B, LANES), out_dtype),
        grid_spec=pltpu.PrefetchScalarGridSpec(
            num_scalar_prefetch=0,
            grid=(n_tiles,),
            in_specs=[
                # Batch tile of observations at natural width (last dim == full dim).
                pl.BlockSpec((TB, obs_dim), lambda i: (i, 0)),
                # Grid-invariant parameters: DMA'd once, resident in VMEM across tiles.
                pl.BlockSpec((obs_dim, LANES), lambda i: (0, 0)),
                pl.BlockSpec((1, LANES), lambda i: (0, 0)),
                pl.BlockSpec((2, LANES, LANES), lambda i: (0, 0, 0)),
            ],
            out_specs=pl.BlockSpec((TB, LANES), lambda i: (i, 0)),
        ),
        compiler_params=pltpu.CompilerParams(
            dimension_semantics=("parallel",)),
        cost_estimate=pl.CostEstimate(
            flops=flops, transcendentals=0, bytes_accessed=bytes_accessed),
    )(x, w1, b1, w23)


def qnet_forward(x, packed, act_dim, *, block_rows=1024, out_dtype=jnp.float32):
    """nn.Module-equivalent forward: returns [B, act_dim] Q-values.

    Note: the trailing slice re-reads the slab; perf-sensitive callers should use
    qnet_apply() and index lanes [0, act_dim) themselves (or fuse their consumer).
    """
    return qnet_apply(x, packed, block_rows=block_rows, out_dtype=out_dtype)[:, :act_dim]


def init_params(key, obs_dim, hidden, act_dim):
    """nn.Linear-style init (uniform +/- 1/sqrt(fan_in)); weights stored [in, out]."""
    sizes = [(obs_dim, hidden), (hidden, hidden), (hidden, act_dim)]
    params = {}
    for i, (fan_in, fan_out) in enumerate(sizes, start=1):
        key, kw, kb = jax.random.split(key, 3)
        bound = 1.0 / jnp.sqrt(jnp.float32(fan_in))
        params[f"w{i}"] = jax.random.uniform(
            kw, (fan_in, fan_out), jnp.float32, -bound, bound)
        params[f"b{i}"] = jax.random.uniform(
            kb, (1, fan_out), jnp.float32, -bound, bound)
    return params


def qnet_reference(x, params):
    h1 = jnp.maximum(x @ params["w1"] + params["b1"], 0.0)
    h2 = jnp.maximum(h1 @ params["w2"] + params["b2"], 0.0)
    return h2 @ params["w3"] + params["b3"]


if __name__ == "__main__":
    # ConnectX-like sizes: observation = 42 board cells + 1 mark = 43, 7 actions.
    batch, obs_dim, hidden, act_dim = 2, 43, 64, 7

    key = jax.random.PRNGKey(0)
    key, kx, kx2 = jax.random.split(key, 3)
    params = init_params(key, obs_dim, hidden, act_dim)
    x = jax.random.normal(kx, (batch, obs_dim), jnp.float32)
    ref = qnet_reference(x, params)

    # 1) Exactness: f32 weights + f32 output, tiny-batch single-block path.
    packed_f32 = pack_qnet_params(params, obs_dim, hidden, act_dim, jnp.float32)
    out = jax.block_until_ready(
        qnet_forward(x, packed_f32, act_dim, out_dtype=jnp.float32))
    assert out.shape == (batch, act_dim)
    assert jnp.allclose(out, ref, atol=1e-5, rtol=1e-5), "f32 mismatch vs reference"

    # 2) Default perf path: bf16 weights, bf16 lane-dense Q slab, no wrapper ops.
    packed = pack_qnet_params(params, obs_dim, hidden, act_dim)  # bf16 default
    slab = jax.block_until_ready(qnet_apply(x, packed))
    assert slab.shape == (batch, LANES)
    assert jnp.allclose(slab[:, :act_dim].astype(jnp.float32), ref,
                        atol=5e-2, rtol=5e-2), "bf16 mismatch vs reference"

    # 3) Multi-tile grid with ragged last tile (B=300, TB=128 -> 3 tiles), bf16
    #    observations streamed straight in (simulating a bf16 replay buffer).
    B2 = 300
    x2 = jax.random.normal(kx2, (B2, obs_dim), jnp.float32)
    ref2 = qnet_reference(x2, params)
    slab2 = jax.block_until_ready(
        qnet_apply(x2.astype(jnp.bfloat16), packed, block_rows=128))
    assert slab2.shape == (B2, LANES)
    assert jnp.allclose(slab2[:, :act_dim].astype(jnp.float32), ref2,
                        atol=1e-1, rtol=1e-1), "bf16 multi-tile mismatch"

    print("KERNEL_OK")
</pallas_src>

<mosaic_0001>
module attributes {stable_mosaic.version = 11 : i64} {
  func.func @qnet_kernel(%arg0: i32, %arg1: memref<2x43xf32, #tpu.memory_space<vmem>>, %arg2: memref<43x128xf32, #tpu.memory_space<vmem>>, %arg3: memref<1x128xf32, #tpu.memory_space<vmem>>, %arg4: memref<2x128x128xf32, #tpu.memory_space<vmem>>, %arg5: memref<2x128xf32, #tpu.memory_space<vmem>>) attributes {dimension_semantics = [#tpu.dimension_semantics<parallel>], iteration_bounds = array<i64: 1>, scalar_prefetch = 0 : i64, scratch_operands = 0 : i64, tpu.core_type = #tpu.core_type<tc>, window_params = [{transform_indices = @transform_0, window_bounds = array<i64: 2, 43>}, {pipeline_mode = #tpu.pipeline_mode<synchronous>, transform_indices = @transform_1, window_bounds = array<i64: 43, 128>}, {pipeline_mode = #tpu.pipeline_mode<synchronous>, transform_indices = @transform_2, window_bounds = array<i64: 1, 128>}, {pipeline_mode = #tpu.pipeline_mode<synchronous>, transform_indices = @transform_3, window_bounds = array<i64: 2, 128, 128>}, {transform_indices = @transform_4, window_bounds = array<i64: 2, 128>}]} {
    %c0 = arith.constant 0 : index
    %c0_0 = arith.constant 0 : index
    %0 = vector.load %arg1[%c0, %c0_0] : memref<2x43xf32, #tpu.memory_space<vmem>>, vector<2x43xf32>
    %c0_1 = arith.constant 0 : index
    %c0_2 = arith.constant 0 : index
    %1 = vector.load %arg2[%c0_1, %c0_2] : memref<43x128xf32, #tpu.memory_space<vmem>>, vector<43x128xf32>
    %cst = arith.constant dense<0.000000e+00> : vector<2x128xf32>
    %2 = tpu.matmul %0, %1, %cst {dimension_numbers = #tpu.dot_dimension_numbers<[1], [0], [0], [1], [0, 0, 1, 1], [], []>} : vector<2x43xf32>, vector<43x128xf32>, vector<2x128xf32> -> vector<2x128xf32>
    %c0_3 = arith.constant 0 : index
    %c0_4 = arith.constant 0 : index
    %3 = vector.load %arg3[%c0_3, %c0_4] : memref<1x128xf32, #tpu.memory_space<vmem>>, vector<1x128xf32>
    %4 = vector.broadcast %3 : vector<1x128xf32> to vector<2x128xf32>
    %5 = arith.addf %2, %4 : vector<2x128xf32>
    %cst_5 = arith.constant 0.000000e+00 : f32
    %6 = vector.broadcast %cst_5 : f32 to vector<2x128xf32>
    %7 = arith.maximumf %5, %6 : vector<2x128xf32>
    %c0_6 = arith.constant 0 : index
    %c0_7 = arith.constant 0 : index
    %c0_8 = arith.constant 0 : index
    %8 = vector.load %arg4[%c0_6, %c0_7, %c0_8] : memref<2x128x128xf32, #tpu.memory_space<vmem>>, vector<1x128x128xf32>
    %9 = vector.shape_cast %8 : vector<1x128x128xf32> to vector<128x128xf32>
    %cst_9 = arith.constant dense<0.000000e+00> : vector<2x128xf32>
    %10 = tpu.matmul %7, %9, %cst_9 {dimension_numbers = #tpu.dot_dimension_numbers<[1], [0], [0], [1], [0, 0, 1, 1], [], []>} : vector<2x128xf32>, vector<128x128xf32>, vector<2x128xf32> -> vector<2x128xf32>
    %cst_10 = arith.constant 0.000000e+00 : f32
    %11 = vector.broadcast %cst_10 : f32 to vector<2x128xf32>
    %12 = arith.maximumf %10, %11 : vector<2x128xf32>
    %c1 = arith.constant 1 : index
    %c0_11 = arith.constant 0 : index
    %c0_12 = arith.constant 0 : index
    %13 = vector.load %arg4[%c1, %c0_11, %c0_12] : memref<2x128x128xf32, #tpu.memory_space<vmem>>, vector<1x128x128xf32>
    %14 = vector.shape_cast %13 : vector<1x128x128xf32> to vector<128x128xf32>
    %cst_13 = arith.constant dense<0.000000e+00> : vector<2x128xf32>
    %15 = tpu.matmul %12, %14, %cst_13 {dimension_numbers = #tpu.dot_dimension_numbers<[1], [0], [0], [1], [0, 0, 1, 1], [], []>} : vector<2x128xf32>, vector<128x128xf32>, vector<2x128xf32> -> vector<2x128xf32>
    %c0_14 = arith.constant 0 : index
    %c0_15 = arith.constant 0 : index
    %16 = vector.load %arg5[%c0_14, %c0_15] : memref<2x128xf32, #tpu.memory_space<vmem>>, vector<2x128xf32>
    tpu.vector_store %arg5[%c0_14, %c0_15], %15 {strides = array<i32>} : memref<2x128xf32, #tpu.memory_space<vmem>>, vector<2x128xf32>,
    return
  }
  func.func @transform_0(%arg0: i32) -> (i32, i32) {
    %c0_i32 = arith.constant 0 : i32
    %c0_i32_0 = arith.constant 0 : i32
    return %arg0, %c0_i32 : i32, i32
  }
  func.func @transform_1(%arg0: i32) -> (i32, i32) {
    %c0_i32 = arith.constant 0 : i32
    %c0_i32_0 = arith.constant 0 : i32
    %c0_i32_1 = arith.constant 0 : i32
    return %c0_i32, %c0_i32_0 : i32, i32
  }
  func.func @transform_2(%arg0: i32) -> (i32, i32) {
    %c0_i32 = arith.constant 0 : i32
    %c0_i32_0 = arith.constant 0 : i32
    %c0_i32_1 = arith.constant 0 : i32
    return %c0_i32, %c0_i32_0 : i32, i32
  }
  func.func @transform_3(%arg0: i32) -> (i32, i32, i32) {
    %c0_i32 = arith.constant 0 : i32
    %c0_i32_0 = arith.constant 0 : i32
    %c0_i32_1 = arith.constant 0 : i32
    %c0_i32_2 = arith.constant 0 : i32
    return %c0_i32, %c0_i32_0, %c0_i32_1 : i32, i32, i32
  }
  func.func @transform_4(%arg0: i32) -> (i32, i32) {
    %c0_i32 = arith.constant 0 : i32
    %c0_i32_0 = arith.constant 0 : i32
    return %arg0, %c0_i32 : i32, i32
  }
}

</mosaic_0001>

<llo_original>
// kernel: qnet_apply.1
$region0: #{qnet_apply.1}
  #allocation0 [shape = 'u32[]', space=smem, size = 0x4, offset = 0x4, fixed_abs, tag = 'smem constant byte address 0x4 - core index']
  #allocation1 [shape = 'u32[144,128]{1,0:T(1,128)}', space=vmem, size = 0x12000, scoped, tag = 'internal scratch']
  %s0 = inlined_call_operand.hbm [shape: f32[2,43], index: 0, kind: input, shape index: {}]
  %s1 = inlined_call_operand.hbm [shape: f32[43,128], index: 1, kind: input, shape index: {}]
  %s2 = inlined_call_operand.vmem [shape: f32[1,128], index: 2, kind: input, shape index: {}]
  %s3 = inlined_call_operand.hbm [shape: f32[2,128,128], index: 3, kind: input, shape index: {}]
  %s4 = inlined_call_operand.hbm [shape: f32[2,128], index: 4, kind: output, shape index: {}]
  %s5 = sld [smem:[#allocation0]]
  $region38: #{qnet_apply.1} parent=0
    _
  %s7 = ssub.s32 1, %s5
  %s8 = scalar_select 0, %s7, %s5
  $region1: #{qnet_apply.1} parent=0
    #allocation2 [shape = 'u8[1024]{0}', space=vmem, size = 0x400, scoped, tag = 'input window, operand 0, single buffered']
    #allocation3 [shape = 's32[1]{0}', space=sflag, size = 0x4, scoped, tag = 'scoped memory for qnet_apply.1']
    #allocation4 [shape = 's32[1]{0}', space=sflag, size = 0x4, scoped, tag = 'scoped memory for qnet_apply.1']
    #allocation5 [shape = 'u8[24576]{0}', space=vmem, size = 0x6000, scoped, tag = 'input window, operand 1, single buffered']
    #allocation6 [shape = 's32[1]{0}', space=sflag, size = 0x4, scoped, tag = 'scoped memory for qnet_apply.1']
    #allocation7 [shape = 'u8[131072]{0}', space=vmem, size = 0x20000, scoped, tag = 'input window, operand 3, single buffered']
    #allocation8 [shape = 'u8[1024]{0}', space=vmem, size = 0x400, scoped, tag = 'output window, operand 0, single buffered']
    %9 = vsyncpa [#allocation3], 0
    %10 = vsyncpa [#allocation6], 0
    %11 = vsyncpa [#allocation4], 0
    // Predicated region
    $region2: #{qnet_apply.1} parent=1 // pred_check
      _
    $region3: #{qnet_apply.1} parent=1 // pred_check_branch
      %13 = sbr.rel (0) target = $region5
    $region4: #{qnet_apply.1} parent=1 // pred_region
      %s15 = ssub.s32 32, 32
      %16 = vsyncadd [#allocation3], %s15
      %s18 = sshll.u32 [#allocation2], 4
      %s19 = int_to_ptr.vmem [resolvable:$true] %s18
      %21 = dma.hbm_to_vmem [thread:$0]  %s0, 32, %s19, [#allocation3]
    $region5: #{qnet_apply.1} parent=1 // pred_fallthru
      _
    // Predicated region
    $region6: #{qnet_apply.1} parent=1 // pred_check
      _
    $region7: #{qnet_apply.1} parent=1 // pred_check_branch
      %23 = sbr.rel (0) target = $region9
    $region8: #{qnet_apply.1} parent=1 // pred_region
      %s25 = ssub.s32 768, 768
      %26 = vsyncadd [#allocation6], %s25
      %s27 = sshll.u32 [#allocation5], 4
      %s28 = int_to_ptr.vmem [resolvable:$true] %s27
      %33 = dma.hbm_to_vmem [thread:$0]  %s1, 768, %s28, [#allocation6], 128, 128, 8
    $region9: #{qnet_apply.1} parent=1 // pred_fallthru
      _
    // Predicated region
    $region10: #{qnet_apply.1} parent=1 // pred_check
      _
    $region11: #{qnet_apply.1} parent=1 // pred_check_branch
      %35 = sbr.rel (0) target = $region13
    $region12: #{qnet_apply.1} parent=1 // pred_region
      _
    $region13: #{qnet_apply.1} parent=1 // pred_fallthru
      _
    // Predicated region
    $region14: #{qnet_apply.1} parent=1 // pred_check
      _
    $region15: #{qnet_apply.1} parent=1 // pred_check_branch
      %37 = sbr.rel (0) target = $region17
    $region16: #{qnet_apply.1} parent=1 // pred_region
      %s39 = ssub.s32 4096, 4096
      %40 = vsyncadd [#allocation6], %s39
      %s41 = sshll.u32 [#allocation7], 4
      %s42 = int_to_ptr.vmem [resolvable:$true] %s41
      %47 = dma.hbm_to_vmem [thread:$0]  %s3, 4096, %s42, [#allocation6], 128, 128, 8
    $region17: #{qnet_apply.1} parent=1 // pred_fallthru
      _
    // Predicated region
    $region18: #{qnet_apply.1} parent=1 // pred_check
      _
    $region19: #{qnet_apply.1} parent=1 // pred_check_branch
      %49 = sbr.rel (0) target = $region21
    $region20: #{qnet_apply.1} parent=1 // pred_region
      %50 = dma.done [#allocation3], 32
    $region21: #{qnet_apply.1} parent=1 // pred_fallthru
      _
    // Predicated region
    $region22: #{qnet_apply.1} parent=1 // pred_check
      _
    $region23: #{qnet_apply.1} parent=1 // pred_check_branch
      %52 = sbr.rel (0) target = $region25
    $region24: #{qnet_apply.1} parent=1 // pred_region
      %53 = dma.done [#allocation6], 768
    $region25: #{qnet_apply.1} parent=1 // pred_fallthru
      _
    // Predicated region
    $region26: #{qnet_apply.1} parent=1 // pred_check
      _
    $region27: #{qnet_apply.1} parent=1 // pred_check_branch
      %55 = sbr.rel (0) target = $region29
    $region28: #{qnet_apply.1} parent=1 // pred_region
      %56 = dma.done [#allocation6], 4096
    $region29: #{qnet_apply.1} parent=1 // pred_fallthru
      _
    %v57 = vld [vmem:[#allocation2] sm:$0x3]
    %v58 = vld [vmem:[#allocation5] sm:$0xff]
    %v59 = vld [vmem:[#allocation5 + $0x8] sm:$0xff]
    %v60 = vld [vmem:[#allocation5 + $0x10] sm:$0xff]
    %v61 = vld [vmem:[#allocation5 + $0x18] sm:$0xff]
    %v62 = vld [vmem:[#allocation5 + $0x20] sm:$0xff]
    %v63 = vld [vmem:[#allocation5 + $0x28] sm:$0x7]
    %v64 = vld [vmem:[%s2] sm:$0x1]
    %v66 = vlaneseq
    %v67 = vshrl.u32 %v66, 7
    %v68 = vsub.s32 0, %v67
    %v69 = vrot.slane %v64, %v68
    %vm71 = vcmask 351232
    %v73 = vsel %vm71, %v57, 0
    %vm75 = vcmask 1042432
    %v77 = vsel %vm75, %v63, 0
    %79 = vmatprep.subr.mxu0 0.0
    %80 = vmatpush1.msra.mxu0 %v58
    %81 = vmatprep.subr.mxu0 0.0
    %82 = vmatpush1.msra.mxu0 %v59
    %83 = vmatprep.subr.mxu0 0.0
    %84 = vmatpush1.msra.mxu0 %v60
    %85 = vmatprep.subr.mxu0 0.0
    %86 = vmatpush1.msra.mxu0 %v61
    %87 = vmatprep.subr.mxu0 0.0
    %88 = vmatpush1.msra.mxu0 %v62
    %89 = vmatprep.subr.mxu0 0.0
    %90 = vmatpush1.msra.mxu0 %v77
    %91 = vmatprep.subr.mxu0 0.0
    %92 = vmatpush1.msra.mxu0 0.0
    %93 = vmatprep.subr.mxu0 0.0
    %94 = vmatpush1.msra.mxu0 0.0
    %95 = vmatprep.subr.mxu0 0.0
    %96 = vmatpush1.msra.mxu0 0.0
    %97 = vmatprep.subr.mxu0 0.0
    %98 = vmatpush1.msra.mxu0 0.0
    %99 = vmatprep.subr.mxu0 0.0
    %100 = vmatpush1.msra.mxu0 0.0
    %101 = vmatprep.subr.mxu0 0.0
    %102 = vmatpush1.msra.mxu0 0.0
    %103 = vmatprep.subr.mxu0 0.0
    %104 = vmatpush1.msra.mxu0 0.0
    %105 = vmatprep.subr.mxu0 0.0
    %106 = vmatpush1.msra.mxu0 0.0
    %107 = vmatprep.subr.mxu0 0.0
    %108 = vmatpush1.msra.mxu0 0.0
    %109 = vmatprep.subr.mxu0 0.0
    %110 = vmatpush1.msra.mxu0 0.0
    %111 = vmatprep.subr.mxu0 0.0
    %112 = vmatpush1.msra.mxu0 0.0
    %113 = vmatprep.subr.mxu0 0.0
    %114 = vmatpush1.msra.mxu0 0.0
    %115 = vmatprep.subr.mxu0 0.0
    %116 = vmatpush1.msra.mxu0 0.0
    %117 = vmatprep.subr.mxu0 0.0
    %118 = vmatpush1.msra.mxu0 0.0
    %119 = vmatprep.subr.mxu0 0.0
    %120 = vmatpush1.msra.mxu0 0.0
    %121 = vmatprep.subr.mxu0 0.0
    %122 = vmatpush1.msra.mxu0 0.0
    %123 = vmatprep.subr.mxu0 0.0
    %124 = vmatpush1.msra.mxu0 0.0
    %125 = vmatprep.subr.mxu0 0.0
    %126 = vmatpush1.msra.mxu0 0.0
    %127 = vmatprep.subr.mxu0 0.0
    %128 = vmatpush1.msra.mxu0 0.0
    %129 = vmatprep.subr.mxu0 0.0
    %130 = vmatpush1.msra.mxu0 0.0
    %131 = vmatprep.subr.mxu0 0.0
    %132 = vmatpush1.msra.mxu0 0.0
    %133 = vmatprep.subr.mxu0 0.0
    %134 = vmatpush1.msra.mxu0 0.0
    %135 = vmatprep.subr.mxu0 0.0
    %136 = vmatpush1.msra.mxu0 0.0
    %137 = vmatprep.subr.mxu0 0.0
    %138 = vmatpush1.msra.mxu0 0.0
    %139 = vmatprep.subr.mxu0 0.0
    %140 = vmatpush1.msra.mxu0 0.0
    %141 = vmatprep.subr.mxu0 0.0
    %142 = vmatpush1.msra.mxu0 0.0
    %143 = vmatprep.mubr.f32.mxu0 0.0
    %144 = vmatmul.mubr.f32.gmra.mrb[0].mxu0 %v73
    %v145 = vpop.f32.mrb[0].mxu0
    %v146 = vadd.f32 %v69, %v145
    %v147 = vpop.f32.mrb[0].mxu0
    %148 = vdwg.mxu0
    %v149 = vmax.f32 %v146, 0.0
    %v150 = vld [vmem:[#allocation7] sm:$0xff]
    %v151 = vld [vmem:[#allocation7 + $0x8] sm:$0xff]
    %v152 = vld [vmem:[#allocation7 + $0x10] sm:$0xff]
    %v153 = vld [vmem:[#allocation7 + $0x18] sm:$0xff]
    %v154 = vld [vmem:[#allocation7 + $0x20] sm:$0xff]
    %v155 = vld [vmem:[#allocation7 + $0x28] sm:$0xff]
    %v156 = vld [vmem:[#allocation7 + $0x30] sm:$0xff]
    %v157 = vld [vmem:[#allocation7 + $0x38] sm:$0xff]
    %v158 = vld [vmem:[#allocation7 + $0x40] sm:$0xff]
    %v159 = vld [vmem:[#allocation7 + $0x48] sm:$0xff]
    %v160 = vld [vmem:[#allocation7 + $0x50] sm:$0xff]
    %v161 = vld [vmem:[#allocation7 + $0x58] sm:$0xff]
    %v162 = vld [vmem:[#allocation7 + $0x60] sm:$0xff]
    %v163 = vld [vmem:[#allocation7 + $0x68] sm:$0xff]
    %v164 = vld [vmem:[#allocation7 + $0x70] sm:$0xff]
    %v165 = vld [vmem:[#allocation7 + $0x78] sm:$0xff]
    %166 = vmatprep.subr.mxu0 0.0
    %167 = vmatpush1.msra.mxu0 %v150
    %168 = vmatprep.subr.mxu0 0.0
    %169 = vmatpush1.msra.mxu0 %v151
    %170 = vmatprep.subr.mxu0 0.0
    %171 = vmatpush1.msra.mxu0 %v152
    %172 = vmatprep.subr.mxu0 0.0
    %173 = vmatpush1.msra.mxu0 %v153
    %174 = vmatprep.subr.mxu0 0.0
    %175 = vmatpush1.msra.mxu0 %v154
    %176 = vmatprep.subr.mxu0 0.0
    %177 = vmatpush1.msra.mxu0 %v155
    %178 = vmatprep.subr.mxu0 0.0
    %179 = vmatpush1.msra.mxu0 %v156
    %180 = vmatprep.subr.mxu0 0.0
    %181 = vmatpush1.msra.mxu0 %v157
    %182 = vmatprep.subr.mxu0 0.0
    %183 = vmatpush1.msra.mxu0 %v158
    %184 = vmatprep.subr.mxu0 0.0
    %185 = vmatpush1.msra.mxu0 %v159
    %186 = vmatprep.subr.mxu0 0.0
    %187 = vmatpush1.msra.mxu0 %v160
    %188 = vmatprep.subr.mxu0 0.0
    %189 = vmatpush1.msra.mxu0 %v161
    %190 = vmatprep.subr.mxu0 0.0
    %191 = vmatpush1.msra.mxu0 %v162
    %192 = vmatprep.subr.mxu0 0.0
    %193 = vmatpush1.msra.mxu0 %v163
    %194 = vmatprep.subr.mxu0 0.0
    %195 = vmatpush1.msra.mxu0 %v164
    %196 = vmatprep.subr.mxu0 0.0
    %197 = vmatpush1.msra.mxu0 %v165
    %198 = vmatprep.subr.mxu0 0.0
    %199 = vmatpush1.msra.mxu0 0.0
    %200 = vmatprep.subr.mxu0 0.0
    %201 = vmatpush1.msra.mxu0 0.0
    %202 = vmatprep.subr.mxu0 0.0
    %203 = vmatpush1.msra.mxu0 0.0
    %204 = vmatprep.subr.mxu0 0.0
    %205 = vmatpush1.msra.mxu0 0.0
    %206 = vmatprep.subr.mxu0 0.0
    %207 = vmatpush1.msra.mxu0 0.0
    %208 = vmatprep.subr.mxu0 0.0
    %209 = vmatpush1.msra.mxu0 0.0
    %210 = vmatprep.subr.mxu0 0.0
    %211 = vmatpush1.msra.mxu0 0.0
    %212 = vmatprep.subr.mxu0 0.0
    %213 = vmatpush1.msra.mxu0 0.0
    %214 = vmatprep.subr.mxu0 0.0
    %215 = vmatpush1.msra.mxu0 0.0
    %216 = vmatprep.subr.mxu0 0.0
    %217 = vmatpush1.msra.mxu0 0.0
    %218 = vmatprep.subr.mxu0 0.0
    %219 = vmatpush1.msra.mxu0 0.0
    %220 = vmatprep.subr.mxu0 0.0
    %221 = vmatpush1.msra.mxu0 0.0
    %222 = vmatprep.subr.mxu0 0.0
    %223 = vmatpush1.msra.mxu0 0.0
    %224 = vmatprep.subr.mxu0 0.0
    %225 = vmatpush1.msra.mxu0 0.0
    %226 = vmatprep.subr.mxu0 0.0
    %227 = vmatpush1.msra.mxu0 0.0
    %228 = vmatprep.subr.mxu0 0.0
    %229 = vmatpush1.msra.mxu0 0.0
    %230 = vmatprep.mubr.f32.mxu0 0.0
    %231 = vmatmul.mubr.f32.gmra.mrb[0].mxu0 %v149
    %v232 = vpop.f32.mrb[0].mxu0
    %v233 = vadd.f32 0.0, %v232
    %v234 = vpop.f32.mrb[0].mxu0
    %235 = vdwg.mxu0
    %v236 = vmax.f32 %v233, 0.0
    %s237 = scalar_lea.vmem [#allocation7], 128
    %v238 = vld [vmem:[%s237] sm:$0xff]
    %v239 = vld [vmem:[%s237 + $0x8] sm:$0xff]
    %v240 = vld [vmem:[%s237 + $0x10] sm:$0xff]
    %v241 = vld [vmem:[%s237 + $0x18] sm:$0xff]
    %v242 = vld [vmem:[%s237 + $0x20] sm:$0xff]
    %v243 = vld [vmem:[%s237 + $0x28] sm:$0xff]
    %v244 = vld [vmem:[%s237 + $0x30] sm:$0xff]
    %v245 = vld [vmem:[%s237 + $0x38] sm:$0xff]
    %v246 = vld [vmem:[%s237 + $0x40] sm:$0xff]
    %v247 = vld [vmem:[%s237 + $0x48] sm:$0xff]
    %v248 = vld [vmem:[%s237 + $0x50] sm:$0xff]
    %v249 = vld [vmem:[%s237 + $0x58] sm:$0xff]
    %v250 = vld [vmem:[%s237 + $0x60] sm:$0xff]
    %v251 = vld [vmem:[%s237 + $0x68] sm:$0xff]
    %v252 = vld [vmem:[%s237 + $0x70] sm:$0xff]
    %v253 = vld [vmem:[%s237 + $0x78] sm:$0xff]
    %254 = vmatprep.subr.mxu0 0.0
    %255 = vmatpush1.msra.mxu0 %v238
    %256 = vmatprep.subr.mxu0 0.0
    %257 = vmatpush1.msra.mxu0 %v239
    %258 = vmatprep.subr.mxu0 0.0
    %259 = vmatpush1.msra.mxu0 %v240
    %260 = vmatprep.subr.mxu0 0.0
    %261 = vmatpush1.msra.mxu0 %v241
    %262 = vmatprep.subr.mxu0 0.0
    %263 = vmatpush1.msra.mxu0 %v242
    %264 = vmatprep.subr.mxu0 0.0
    %265 = vmatpush1.msra.mxu0 %v243
    %266 = vmatprep.subr.mxu0 0.0
    %267 = vmatpush1.msra.mxu0 %v244
    %268 = vmatprep.subr.mxu0 0.0
    %269 = vmatpush1.msra.mxu0 %v245
    %270 = vmatprep.subr.mxu0 0.0
    %271 = vmatpush1.msra.mxu0 %v246
    %272 = vmatprep.subr.mxu0 0.0
    %273 = vmatpush1.msra.mxu0 %v247
    %274 = vmatprep.subr.mxu0 0.0
    %275 = vmatpush1.msra.mxu0 %v248
    %276 = vmatprep.subr.mxu0 0.0
    %277 = vmatpush1.msra.mxu0 %v249
    %278 = vmatprep.subr.mxu0 0.0
    %279 = vmatpush1.msra.mxu0 %v250
    %280 = vmatprep.subr.mxu0 0.0
    %281 = vmatpush1.msra.mxu0 %v251
    %282 = vmatprep.subr.mxu0 0.0
    %283 = vmatpush1.msra.mxu0 %v252
    %284 = vmatprep.subr.mxu0 0.0
    %285 = vmatpush1.msra.mxu0 %v253
    %286 = vmatprep.subr.mxu0 0.0
    %287 = vmatpush1.msra.mxu0 0.0
    %288 = vmatprep.subr.mxu0 0.0
    %289 = vmatpush1.msra.mxu0 0.0
    %290 = vmatprep.subr.mxu0 0.0
    %291 = vmatpush1.msra.mxu0 0.0
    %292 = vmatprep.subr.mxu0 0.0
    %293 = vmatpush1.msra.mxu0 0.0
    %294 = vmatprep.subr.mxu0 0.0
    %295 = vmatpush1.msra.mxu0 0.0
    %296 = vmatprep.subr.mxu0 0.0
    %297 = vmatpush1.msra.mxu0 0.0
    %298 = vmatprep.subr.mxu0 0.0
    %299 = vmatpush1.msra.mxu0 0.0
    %300 = vmatprep.subr.mxu0 0.0
    %301 = vmatpush1.msra.mxu0 0.0
    %302 = vmatprep.subr.mxu0 0.0
    %303 = vmatpush1.msra.mxu0 0.0
    %304 = vmatprep.subr.mxu0 0.0
    %305 = vmatpush1.msra.mxu0 0.0
    %306 = vmatprep.subr.mxu0 0.0
    %307 = vmatpush1.msra.mxu0 0.0
    %308 = vmatprep.subr.mxu0 0.0
    %309 = vmatpush1.msra.mxu0 0.0
    %310 = vmatprep.subr.mxu0 0.0
    %311 = vmatpush1.msra.mxu0 0.0
    %312 = vmatprep.subr.mxu0 0.0
    %313 = vmatpush1.msra.mxu0 0.0
    %314 = vmatprep.subr.mxu0 0.0
    %315 = vmatpush1.msra.mxu0 0.0
    %316 = vmatprep.subr.mxu0 0.0
    %317 = vmatpush1.msra.mxu0 0.0
    %318 = vmatprep.mubr.f32.mxu0 0.0
    %319 = vmatmul.mubr.f32.gmra.mrb[0].mxu0 %v236
    %v320 = vpop.f32.mrb[0].mxu0
    %v321 = vadd.f32 0.0, %v320
    %v322 = vpop.f32.mrb[0].mxu0
    %323 = vdwg.mxu0
    %324 = vst [vmem:[#allocation8] sm:$0x3] %v321
    // Predicated region
    $region30: #{qnet_apply.1} parent=1 // pred_check
      _
    $region31: #{qnet_apply.1} parent=1 // pred_check_branch
      %326 = sbr.rel (0) target = $region33
    $region32: #{qnet_apply.1} parent=1 // pred_region
      %s328 = ssub.s32 32, 32
      %329 = vsyncadd [#allocation4], %s328
      %s331 = sshll.u32 [#allocation8], 4
      %s332 = int_to_ptr.vmem [resolvable:$true] %s331
      %334 = dma.vmem_to_hbm [thread:$0]  %s332, 32, %s4, [#allocation4]
    $region33: #{qnet_apply.1} parent=1 // pred_fallthru
      _
    // Predicated region
    $region34: #{qnet_apply.1} parent=1 // pred_check
      _
    $region35: #{qnet_apply.1} parent=1 // pred_check_branch
      %336 = sbr.rel (0) target = $region37
    $region36: #{qnet_apply.1} parent=1 // pred_region
      %337 = dma.done [#allocation4], 32
    $region37: #{qnet_apply.1} parent=1 // pred_fallthru
      _
    %338 = vsyncpa [#allocation3], 1
    %339 = vsyncpa [#allocation6], 1
    %340 = vsyncpa [#allocation4], 1

</llo_original>
